<compile_context>
chip_gen: v5e
topology: v5e:2x2
jax: 0.10.0
libtpu: 0.0.40
codegen_flags: <defaults>
</compile_context>

<pallas_src>
import math

import numpy as np

import jax
import jax.numpy as jnp
from jax import lax
from jax.experimental import pallas as pl
from jax.experimental.pallas import tpu as pltpu


def _round_up(x: int, m: int) -> int:
    return (x + m - 1) // m * m


def _cdiv(a: int, b: int) -> int:
    return (a + b - 1) // b


def _cc_kernel_factory(gamma: float, p_order: int):
    # Taylor coefficients of the Gaussian-RBF expansion:
    #   c_p = exp(-2*gamma) * (2*gamma)^p / p!
    coeffs = [
        math.exp(-2.0 * gamma) * (2.0 * gamma) ** p / math.factorial(p)
        for p in range(p_order + 1)
    ]

    def _poly_factor(s, t):
        # corr(s) - corr(t) == (s - t) * g(s, t), where
        #   g = sum_{p>=1} c_p * (s^{p-1} + s^{p-2} t + ... + t^{p-1})
        # built with the recurrence h_1 = 1, h_{p} = s*h_{p-1} + t^{p-1}.
        # (c_0 cancels exactly, so zero-padded rows contribute exactly 0.)
        if p_order == 0:
            return jnp.zeros_like(s)
        g = jnp.full_like(s, coeffs[1])
        h = None
        tp = t
        for p in range(2, p_order + 1):
            h = (s + tp) if h is None else (s * h + tp)
            g = g + coeffs[p] * h
            if p < p_order:
                tp = tp * t
        return g

    def kernel(rows_ref, cols_ref, wgts_ref,
               fs_i_ref, fs_j_ref, ft_i_ref, ft_j_ref, out_ref):
        g_id = pl.program_id(0)
        t_id = pl.program_id(1)

        @pl.when(t_id == 0)
        def _():
            out_ref[...] = jnp.zeros_like(out_ref)

        # A @ B.T fed straight to the MXU by contracting the shared feature axis
        # (same pattern as the flash-attention q@k.T path; no explicit transpose).
        dn = (((1,), (1,)), ((), ()))
        sim_s = lax.dot_general(fs_i_ref[...], fs_j_ref[...], dn,
                                preferred_element_type=jnp.float32)
        sim_t = lax.dot_general(ft_i_ref[...], ft_j_ref[...], dn,
                                preferred_element_type=jnp.float32)

        diff = (sim_s - sim_t) * _poly_factor(sim_s, sim_t)

        # Triangular-tile weight: 1 for diagonal tiles, 2 for off-diagonal tiles
        # (symmetry of the correlation matrices), 0 for schedule-padding steps.
        w = wgts_ref[g_id, t_id].astype(jnp.float32)

        # Elementwise accumulate into the VMEM-resident output block: pure VPU work,
        # no per-step cross-lane (XLU) reduction. Final reduction is in the wrapper.
        out_ref[0, :, :] = out_ref[0, :, :] + w * (diff * diff)

    return kernel


def cc_loss(feat_s, feat_t, gamma: float = 0.4, p_order: int = 2,
            tile: int = 512, matmul_dtype=jnp.bfloat16):
    """Pallas-TPU CC loss == F.mse_loss(corr(feat_s), corr(feat_t)).

    `matmul_dtype=jnp.bfloat16` (default) runs the Gram matmuls at bf16 MXU rate;
    pass `jnp.float32` for bit-accurate parity with the f32 PyTorch reference.
    """
    assert feat_s.shape == feat_t.shape and feat_s.ndim == 2
    b, d = feat_s.shape
    matmul_dtype = jnp.dtype(matmul_dtype)
    item = matmul_dtype.itemsize
    align = 16 if item < 4 else 8   # sublane packing: 16 rows for bf16, 8 for f32

    # ---- VMEM budget, per generation (128 MiB v5e/v6e, 64 MiB v7x) ----
    try:
        vmem_cap = int(pltpu.get_tpu_info().vmem_capacity_bytes)
    except Exception:
        vmem_cap = 64 * 1024 * 1024          # conservative fallback (v7x per-core)
    vmem_limit = min(vmem_cap * 3 // 4, 112 * 1024 * 1024)
    vmem_budget = int(vmem_limit * 0.85)     # headroom for Mosaic temporaries

    def _vmem_bytes(t_):
        # 4 feature streams x 2 pipeline buffers + f32 (t_, t_) tile temporaries
        # (sim_s/sim_t/diff/poly) + resident output block.
        return 4 * 2 * t_ * d * item + 8 * t_ * t_ * 4

    # ---- adaptive tiling: alignment-only padding, shrink tile if VMEM-bound ----
    tm = max(align, _round_up(min(int(tile), _round_up(b, align)), align))
    while tm > align and _vmem_bytes(tm) > vmem_budget:
        tm -= align
    n_tiles = _cdiv(b, tm)
    tm = _round_up(_cdiv(b, n_tiles), align)  # spread rows evenly -> minimal padding
    b_pad = tm * n_tiles
    # TODO(synk): for very large D (when even the smallest tile blows the budget), add
    # a third "arbitrary" K grid axis with (tm, tk) feature blocks and f32 sim
    # accumulators in VMEM scratch instead of full-D feature tiles (v7x's 64 MiB VMEM).

    # ---- hoisted L2 normalization (once per feature matrix, not per tile visit) ----
    def _prep(x):
        xf = x.astype(jnp.float32)
        inv = lax.rsqrt(jnp.maximum(jnp.sum(xf * xf, axis=-1, keepdims=True), 1e-24))
        xn = (xf * inv).astype(matmul_dtype)
        if b_pad != b:
            xn = jnp.pad(xn, ((0, b_pad - b), (0, 0)))   # zero rows contribute exactly 0
        return xn

    fs = _prep(feat_s)
    ft = _prep(feat_t)

    # ---- upper-triangle tile schedule (symmetry: ~2x fewer MXU flops / HBM reads) ----
    pairs = [(i, j) for i in range(n_tiles) for j in range(i, n_tiles)]
    n_groups = 2 if len(pairs) >= 2 else 1    # leading "parallel" axis -> v7x 2-TC split
    steps = _cdiv(len(pairs), n_groups)
    rows = np.zeros((n_groups, steps), np.int32)
    cols = np.zeros((n_groups, steps), np.int32)
    wgts = np.zeros((n_groups, steps), np.int32)   # 0 marks schedule padding
    for k, (i, j) in enumerate(pairs):
        g_, t_ = divmod(k, steps)                  # contiguous halves keep row-tile reuse
        rows[g_, t_], cols[g_, t_] = i, j
        wgts[g_, t_] = 1 if i == j else 2

    kernel = _cc_kernel_factory(float(gamma), int(p_order))

    row_spec = pl.BlockSpec((tm, d), lambda g, t, r, c, w: (r[g, t], 0))
    col_spec = pl.BlockSpec((tm, d), lambda g, t, r, c, w: (c[g, t], 0))

    grid_spec = pltpu.PrefetchScalarGridSpec(
        num_scalar_prefetch=3,
        grid=(n_groups, steps),
        in_specs=[row_spec, col_spec, row_spec, col_spec],
        out_specs=pl.BlockSpec((1, tm, tm), lambda g, t, r, c, w: (g, 0, 0)),
    )

    partials = pl.pallas_call(
        kernel,
        grid_spec=grid_spec,
        out_shape=jax.ShapeDtypeStruct((n_groups, tm, tm), jnp.float32),
        compiler_params=pltpu.CompilerParams(
            dimension_semantics=("parallel", "arbitrary"),
            vmem_limit_bytes=int(vmem_limit),
        ),
    )(jnp.asarray(rows), jnp.asarray(cols), jnp.asarray(wgts), fs, fs, ft, ft)

    # F.mse_loss(reduction='mean') over the true B*B entries.
    return jnp.sum(partials) * (1.0 / float(b * b))


def _cc_loss_ref(feat_s, feat_t, gamma: float, p_order: int):
    # Pure-JAX reference (mirrors the PyTorch module).
    def corr(feat):
        feat = feat.astype(jnp.float32)
        feat = feat / jnp.maximum(
            jnp.linalg.norm(feat, axis=-1, keepdims=True), 1e-12
        )
        sim = feat @ feat.T
        c = jnp.zeros_like(sim)
        for p in range(p_order + 1):
            c = c + math.exp(-2 * gamma) * (2 * gamma) ** p / math.factorial(p) * sim ** p
        return c

    diff = corr(feat_s) - corr(feat_t)
    return jnp.mean(diff * diff)


if __name__ == "__main__":
    key = jax.random.PRNGKey(0)
    k1, k2, k3, k4 = jax.random.split(key, 4)
    gamma, p_order = 0.4, 2

    # Case 1: batch=8, hidden=32, single tile, f32 MXU path (tight parity check).
    B, D = 8, 32
    feat_s = jax.random.normal(k1, (B, D), dtype=jnp.float32)
    feat_t = jax.random.normal(k2, (B, D), dtype=jnp.float32)
    loss = jax.block_until_ready(
        cc_loss(feat_s, feat_t, gamma=gamma, p_order=p_order, matmul_dtype=jnp.float32)
    )
    ref = jax.block_until_ready(_cc_loss_ref(feat_s, feat_t, gamma, p_order))
    assert jnp.allclose(loss, ref, rtol=1e-4, atol=1e-6), (loss, ref)

    # Case 2: ragged batch (alignment-only zero padding), multi-tile triangular grid
    # with off-diagonal weight 2, two schedule groups, default bf16 MXU path.
    B2, D2 = 37, 128
    fs2 = jax.random.normal(k3, (B2, D2), dtype=jnp.float32)
    ft2 = jax.random.normal(k4, (B2, D2), dtype=jnp.float32)
    loss2 = jax.block_until_ready(
        cc_loss(fs2, ft2, gamma=gamma, p_order=p_order, tile=16)
    )
    ref2 = jax.block_until_ready(_cc_loss_ref(fs2, ft2, gamma, p_order))
    assert jnp.allclose(loss2, ref2, rtol=5e-2, atol=1e-4), (loss2, ref2)

    print("KERNEL_OK")
</pallas_src>

<mosaic_0001>
module attributes {stable_mosaic.version = 11 : i64} {
  func.func @kernel(%arg0: i32, %arg1: i32, %arg2: memref<1x1xi32, #tpu.memory_space<smem>>, %arg3: memref<1x1xi32, #tpu.memory_space<smem>>, %arg4: memref<1x1xi32, #tpu.memory_space<smem>>, %arg5: memref<8x32xf32, #tpu.memory_space<vmem>>, %arg6: memref<8x32xf32, #tpu.memory_space<vmem>>, %arg7: memref<8x32xf32, #tpu.memory_space<vmem>>, %arg8: memref<8x32xf32, #tpu.memory_space<vmem>>, %arg9: memref<1x8x8xf32, #tpu.memory_space<vmem>>) attributes {dimension_semantics = [#tpu.dimension_semantics<parallel>, #tpu.dimension_semantics<arbitrary>], iteration_bounds = array<i64: 1, 1>, scalar_prefetch = 3 : i64, scratch_operands = 0 : i64, tpu.core_type = #tpu.core_type<tc>, window_params = [{transform_indices = @transform_0, window_bounds = array<i64: 8, 32>}, {transform_indices = @transform_1, window_bounds = array<i64: 8, 32>}, {transform_indices = @transform_2, window_bounds = array<i64: 8, 32>}, {transform_indices = @transform_3, window_bounds = array<i64: 8, 32>}, {transform_indices = @transform_4, window_bounds = array<i64: 1, 8, 8>}]} {
    %c0_i32 = arith.constant 0 : i32
    %0 = arith.cmpi eq, %arg1, %c0_i32 : i32
    %1 = arith.extui %0 : i1 to i32
    %c0_i32_0 = arith.constant 0 : i32
    %2 = arith.cmpi ne, %1, %c0_i32_0 : i32
    scf.if %2 {
      %cst_17 = arith.constant 0.000000e+00 : f32
      %29 = vector.broadcast %cst_17 : f32 to vector<1x8x8xf32>
      %c0_18 = arith.constant 0 : index
      %c0_19 = arith.constant 0 : index
      %c0_20 = arith.constant 0 : index
      %30 = vector.load %arg9[%c0_18, %c0_19, %c0_20] : memref<1x8x8xf32, #tpu.memory_space<vmem>>, vector<1x8x8xf32>
      tpu.vector_store %arg9[%c0_18, %c0_19, %c0_20], %29 {strides = array<i32>} : memref<1x8x8xf32, #tpu.memory_space<vmem>>, vector<1x8x8xf32>,
    } else {
    }
    %c0 = arith.constant 0 : index
    %c0_1 = arith.constant 0 : index
    %3 = vector.load %arg5[%c0, %c0_1] : memref<8x32xf32, #tpu.memory_space<vmem>>, vector<8x32xf32>
    %c0_2 = arith.constant 0 : index
    %c0_3 = arith.constant 0 : index
    %4 = vector.load %arg6[%c0_2, %c0_3] : memref<8x32xf32, #tpu.memory_space<vmem>>, vector<8x32xf32>
    %cst = arith.constant dense<0.000000e+00> : vector<8x8xf32>
    %5 = tpu.matmul %3, %4, %cst {dimension_numbers = #tpu.dot_dimension_numbers<[1], [1], [0], [0], [0, 0, 1, 0], [], []>} : vector<8x32xf32>, vector<8x32xf32>, vector<8x8xf32> -> vector<8x8xf32>
    %c0_4 = arith.constant 0 : index
    %c0_5 = arith.constant 0 : index
    %6 = vector.load %arg7[%c0_4, %c0_5] : memref<8x32xf32, #tpu.memory_space<vmem>>, vector<8x32xf32>
    %c0_6 = arith.constant 0 : index
    %c0_7 = arith.constant 0 : index
    %7 = vector.load %arg8[%c0_6, %c0_7] : memref<8x32xf32, #tpu.memory_space<vmem>>, vector<8x32xf32>
    %cst_8 = arith.constant dense<0.000000e+00> : vector<8x8xf32>
    %8 = tpu.matmul %6, %7, %cst_8 {dimension_numbers = #tpu.dot_dimension_numbers<[1], [1], [0], [0], [0, 0, 1, 0], [], []>} : vector<8x32xf32>, vector<8x32xf32>, vector<8x8xf32> -> vector<8x8xf32>
    %9 = arith.subf %5, %8 : vector<8x8xf32>
    %cst_9 = arith.constant 0.359463185 : f32
    %10 = vector.broadcast %cst_9 : f32 to vector<8x8xf32>
    %11 = arith.addf %5, %8 : vector<8x8xf32>
    %cst_10 = arith.constant 0.143785268 : f32
    %12 = vector.broadcast %cst_10 : f32 to vector<8x8xf32>
    %13 = arith.mulf %12, %11 : vector<8x8xf32>
    %14 = arith.addf %10, %13 : vector<8x8xf32>
    %15 = arith.mulf %9, %14 : vector<8x8xf32>
    %16 = arith.index_cast %arg0 : i32 to index
    %17 = arith.index_cast %arg1 : i32 to index
    %18 = memref.load %arg4[%16, %17] : memref<1x1xi32, #tpu.memory_space<smem>>
    %19 = arith.sitofp %18 : i32 to f32
    %c0_11 = arith.constant 0 : index
    %c0_12 = arith.constant 0 : index
    %c0_13 = arith.constant 0 : index
    %20 = vector.load %arg9[%c0_11, %c0_12, %c0_13] : memref<1x8x8xf32, #tpu.memory_space<vmem>>, vector<1x8x8xf32>
    %21 = vector.shape_cast %20 : vector<1x8x8xf32> to vector<8x8xf32>
    %22 = arith.mulf %15, %15 : vector<8x8xf32>
    %23 = vector.broadcast %19 : f32 to vector<8x8xf32>
    %24 = arith.mulf %23, %22 : vector<8x8xf32>
    %25 = arith.addf %21, %24 : vector<8x8xf32>
    %c0_14 = arith.constant 0 : index
    %c0_15 = arith.constant 0 : index
    %c0_16 = arith.constant 0 : index
    %26 = vector.load %arg9[%c0_14, %c0_15, %c0_16] : memref<1x8x8xf32, #tpu.memory_space<vmem>>, vector<1x8x8xf32>
    %27 = vector.shape_cast %26 : vector<1x8x8xf32> to vector<8x8xf32>
    %28 = vector.shape_cast %25 : vector<8x8xf32> to vector<1x8x8xf32>
    tpu.vector_store %arg9[%c0_14, %c0_15, %c0_16], %28 {strides = array<i32>} : memref<1x8x8xf32, #tpu.memory_space<vmem>>, vector<1x8x8xf32>,
    return
  }
  func.func @transform_0(%arg0: i32, %arg1: i32, %arg2: memref<1x1xi32, #tpu.memory_space<smem>>, %arg3: memref<1x1xi32, #tpu.memory_space<smem>>, %arg4: memref<1x1xi32, #tpu.memory_space<smem>>) -> (i32, i32) {
    %0 = arith.index_cast %arg0 : i32 to index
    %1 = arith.index_cast %arg1 : i32 to index
    %2 = memref.load %arg2[%0, %1] : memref<1x1xi32, #tpu.memory_space<smem>>
    %c0_i32 = arith.constant 0 : i32
    %c0_i32_0 = arith.constant 0 : i32
    return %2, %c0_i32 : i32, i32
  }
  func.func @transform_1(%arg0: i32, %arg1: i32, %arg2: memref<1x1xi32, #tpu.memory_space<smem>>, %arg3: memref<1x1xi32, #tpu.memory_space<smem>>, %arg4: memref<1x1xi32, #tpu.memory_space<smem>>) -> (i32, i32) {
    %0 = arith.index_cast %arg0 : i32 to index
    %1 = arith.index_cast %arg1 : i32 to index
    %2 = memref.load %arg3[%0, %1] : memref<1x1xi32, #tpu.memory_space<smem>>
    %c0_i32 = arith.constant 0 : i32
    %c0_i32_0 = arith.constant 0 : i32
    return %2, %c0_i32 : i32, i32
  }
  func.func @transform_2(%arg0: i32, %arg1: i32, %arg2: memref<1x1xi32, #tpu.memory_space<smem>>, %arg3: memref<1x1xi32, #tpu.memory_space<smem>>, %arg4: memref<1x1xi32, #tpu.memory_space<smem>>) -> (i32, i32) {
    %0 = arith.index_cast %arg0 : i32 to index
    %1 = arith.index_cast %arg1 : i32 to index
    %2 = memref.load %arg2[%0, %1] : memref<1x1xi32, #tpu.memory_space<smem>>
    %c0_i32 = arith.constant 0 : i32
    %c0_i32_0 = arith.constant 0 : i32
    return %2, %c0_i32 : i32, i32
  }
  func.func @transform_3(%arg0: i32, %arg1: i32, %arg2: memref<1x1xi32, #tpu.memory_space<smem>>, %arg3: memref<1x1xi32, #tpu.memory_space<smem>>, %arg4: memref<1x1xi32, #tpu.memory_space<smem>>) -> (i32, i32) {
    %0 = arith.index_cast %arg0 : i32 to index
    %1 = arith.index_cast %arg1 : i32 to index
    %2 = memref.load %arg3[%0, %1] : memref<1x1xi32, #tpu.memory_space<smem>>
    %c0_i32 = arith.constant 0 : i32
    %c0_i32_0 = arith.constant 0 : i32
    return %2, %c0_i32 : i32, i32
  }
  func.func @transform_4(%arg0: i32, %arg1: i32, %arg2: memref<1x1xi32, #tpu.memory_space<smem>>, %arg3: memref<1x1xi32, #tpu.memory_space<smem>>, %arg4: memref<1x1xi32, #tpu.memory_space<smem>>) -> (i32, i32, i32) {
    %c0_i32 = arith.constant 0 : i32
    %c0_i32_0 = arith.constant 0 : i32
    %c0_i32_1 = arith.constant 0 : i32
    return %arg0, %c0_i32, %c0_i32_0 : i32, i32, i32
  }
}

</mosaic_0001>

<llo_original>
// kernel: tpu_custom_call.1
$region0: #{tpu_custom_call.1}
  #allocation0 [shape = 'u32[]', space=smem, size = 0x4, offset = 0x4, fixed_abs, tag = 'smem constant byte address 0x4 - core index']
  #allocation1 [shape = 'u32[72,128]{1,0:T(1,128)}', space=vmem, size = 0x9000, scoped, tag = 'internal scratch']
  #allocation2 [shape = 's32[1]{0}', space=sflag, size = 0x4, scoped, tag = 'scoped memory for tpu_custom_call.1']
  #allocation3 [shape = 's32[1,1]{1,0:T(1,128)S(6)}', space=smem, size = 0x200, scoped, tag = 'prefetched SMEM operand 0']
  #allocation4 [shape = 's32[1,1]{1,0:T(1,128)S(6)}', space=smem, size = 0x200, scoped, tag = 'prefetched SMEM operand 1']
  #allocation5 [shape = 's32[1,1]{1,0:T(1,128)S(6)}', space=smem, size = 0x200, scoped, tag = 'prefetched SMEM operand 2']
  %s0 = inlined_call_operand.<no memory space> [shape: s32[1,1], index: 0, kind: input, shape index: {}]
  %s1 = inlined_call_operand.<no memory space> [shape: s32[1,1], index: 1, kind: input, shape index: {}]
  %s2 = inlined_call_operand.<no memory space> [shape: s32[1,1], index: 2, kind: input, shape index: {}]
  %s3 = inlined_call_operand.hbm [shape: f32[8,32], index: 3, kind: input, shape index: {}]
  %s4 = inlined_call_operand.hbm [shape: f32[8,32], index: 4, kind: input, shape index: {}]
  %s5 = inlined_call_operand.hbm [shape: f32[8,32], index: 5, kind: input, shape index: {}]
  %s6 = inlined_call_operand.vmem [shape: f32[8,32], index: 6, kind: input, shape index: {}]
  %s7 = inlined_call_operand.hbm [shape: f32[1,8,8], index: 7, kind: output, shape index: {}]
  %s8 = sld [smem:[#allocation0]]
  $region42: #{tpu_custom_call.1} parent=0
    _
  %s10 = ssub.s32 1, %s8
  %s11 = scalar_select 0, %s10, %s8
  %12 = sst [smem:[#allocation3]] %s0
  %13 = sst [smem:[#allocation4]] %s1
  %14 = sst [smem:[#allocation5]] %s2
  $region1: #{tpu_custom_call.1} parent=0
    #allocation6 [shape = 'u8[4096]{0}', space=vmem, size = 0x1000, scoped, tag = 'input window, operand 3, single buffered']
    #allocation7 [shape = 's32[1]{0}', space=sflag, size = 0x4, scoped, tag = 'scoped memory for tpu_custom_call.1']
    #allocation8 [shape = 's32[1]{0}', space=sflag, size = 0x4, scoped, tag = 'scoped memory for tpu_custom_call.1']
    #allocation9 [shape = 'u8[4096]{0}', space=vmem, size = 0x1000, scoped, tag = 'input window, operand 4, single buffered']
    #allocation10 [shape = 's32[1]{0}', space=sflag, size = 0x4, scoped, tag = 'scoped memory for tpu_custom_call.1']
    #allocation11 [shape = 'u8[4096]{0}', space=vmem, size = 0x1000, scoped, tag = 'input window, operand 5, single buffered']
    #allocation12 [shape = 'u8[4096]{0}', space=vmem, size = 0x1000, scoped, tag = 'output window, operand 0, single buffered']
    %15 = vsyncpa [#allocation7], 0
    %16 = vsyncpa [#allocation10], 0
    %17 = vsyncpa [#allocation8], 0
    // Predicated region
    $region2: #{tpu_custom_call.1} parent=1 // pred_check
      _
    $region3: #{tpu_custom_call.1} parent=1 // pred_check_branch
      %19 = sbr.rel (0) target = $region5
    $region4: #{tpu_custom_call.1} parent=1 // pred_region
      %s20 = sadd.s32 0, 0
      %s21 = smul.u32 %s20, 128
      %s22 = sadd.s32 %s21, 0
      %s23 = sld [smem:[#allocation3 + %s22]]
      %25 = vsyncadd [#allocation7], 0
      %s26 = smul.addr %s23, 8
      %s27 = scalar_lea.hbm %s3, %s26
      %s29 = sshll.u32 %s27, 4
      %s30 = int_to_ptr.hbm [resolvable:$true] %s29
      %s31 = sshll.u32 [#allocation6], 4
      %s32 = int_to_ptr.vmem [resolvable:$true] %s31
      %34 = dma.hbm_to_vmem [thread:$0]  %s30, 128, %s32, [#allocation7]
    $region5: #{tpu_custom_call.1} parent=1 // pred_fallthru
      _
    // Predicated region
    $region6: #{tpu_custom_call.1} parent=1 // pred_check
      _
    $region7: #{tpu_custom_call.1} parent=1 // pred_check_branch
      %36 = sbr.rel (0) target = $region9
    $region8: #{tpu_custom_call.1} parent=1 // pred_region
      %s37 = sadd.s32 0, 0
      %s38 = smul.u32 %s37, 128
      %s39 = sadd.s32 %s38, 0
      %s40 = sld [smem:[#allocation4 + %s39]]
      %42 = vsyncadd [#allocation10], 0
      %s43 = smul.addr %s40, 8
      %s44 = scalar_lea.hbm %s4, %s43
      %s46 = sshll.u32 %s44, 4
      %s47 = int_to_ptr.hbm [resolvable:$true] %s46
      %s48 = sshll.u32 [#allocation9], 4
      %s49 = int_to_ptr.vmem [resolvable:$true] %s48
      %51 = dma.hbm_to_vmem [thread:$0]  %s47, 128, %s49, [#allocation10]
    $region9: #{tpu_custom_call.1} parent=1 // pred_fallthru
      _
    // Predicated region
    $region10: #{tpu_custom_call.1} parent=1 // pred_check
      _
    $region11: #{tpu_custom_call.1} parent=1 // pred_check_branch
      %53 = sbr.rel (0) target = $region13
    $region12: #{tpu_custom_call.1} parent=1 // pred_region
      %s54 = sadd.s32 0, 0
      %s55 = smul.u32 %s54, 128
      %s56 = sadd.s32 %s55, 0
      %s57 = sld [smem:[#allocation3 + %s56]]
      %59 = vsyncadd [#allocation10], 0
      %s60 = smul.addr %s57, 8
      %s61 = scalar_lea.hbm %s5, %s60
      %s63 = sshll.u32 %s61, 4
      %s64 = int_to_ptr.hbm [resolvable:$true] %s63
      %s65 = sshll.u32 [#allocation11], 4
      %s66 = int_to_ptr.vmem [resolvable:$true] %s65
      %68 = dma.hbm_to_vmem [thread:$0]  %s64, 128, %s66, [#allocation10]
    $region13: #{tpu_custom_call.1} parent=1 // pred_fallthru
      _
    // Predicated region
    $region14: #{tpu_custom_call.1} parent=1 // pred_check
      _
    $region15: #{tpu_custom_call.1} parent=1 // pred_check_branch
      %70 = sbr.rel (0) target = $region17
    $region16: #{tpu_custom_call.1} parent=1 // pred_region
      %s71 = sadd.s32 0, 0
      %s72 = smul.u32 %s71, 128
      %s73 = sadd.s32 %s72, 0
      %s74 = sld [smem:[#allocation4 + %s73]]
      %p75 = scmp.lt.s32.totalorder %s74, 0
      %s76 = scalar_select %p75, %s74, 0
      %s77 = smul.addr %s76, 8
      %s78 = scalar_lea.vmem %s6, %s77
      %s79 = sadd.s32 0, 0
      %s80 = smul.u32 %s79, 128
      %s81 = sadd.s32 %s80, 0
      %s82 = sld [smem:[#allocation4 + %s81]]
    $region17: #{tpu_custom_call.1} parent=1 // pred_fallthru
      _
    // Predicated region
    $region18: #{tpu_custom_call.1} parent=1 // pred_check
      _
    $region19: #{tpu_custom_call.1} parent=1 // pred_check_branch
      %84 = sbr.rel (0) target = $region21
    $region20: #{tpu_custom_call.1} parent=1 // pred_region
      %86 = dma.done [#allocation7], 128
    $region21: #{tpu_custom_call.1} parent=1 // pred_fallthru
      _
    // Predicated region
    $region22: #{tpu_custom_call.1} parent=1 // pred_check
      _
    $region23: #{tpu_custom_call.1} parent=1 // pred_check_branch
      %88 = sbr.rel (0) target = $region25
    $region24: #{tpu_custom_call.1} parent=1 // pred_region
      %90 = dma.done [#allocation10], 128
    $region25: #{tpu_custom_call.1} parent=1 // pred_fallthru
      _
    // Predicated region
    $region26: #{tpu_custom_call.1} parent=1 // pred_check
      _
    $region27: #{tpu_custom_call.1} parent=1 // pred_check_branch
      %92 = sbr.rel (0) target = $region29
    $region28: #{tpu_custom_call.1} parent=1 // pred_region
      %94 = dma.done [#allocation10], 128
    $region29: #{tpu_custom_call.1} parent=1 // pred_fallthru
      _
    %s95 = sadd.s32 0, 0
    %s96 = smul.u32 %s95, 128
    %s97 = sadd.s32 %s96, 0
    %s98 = sld [smem:[#allocation4 + %s97]]
    %p99 = scmp.lt.s32.totalorder %s98, 0
    %s100 = scalar_select %p99, %s98, 0
    %s101 = smul.addr %s100, 8
    %s102 = scalar_lea.vmem %s6, %s101
    %s103 = sadd.s32 0, 0
    %s104 = smul.u32 %s103, 128
    %s105 = sadd.s32 %s104, 0
    %s106 = sld [smem:[#allocation3 + %s105]]
    %s107 = sadd.s32 0, 0
    %s108 = smul.u32 %s107, 128
    %s109 = sadd.s32 %s108, 0
    %s110 = sld [smem:[#allocation4 + %s109]]
    %s111 = sadd.s32 0, 0
    %s112 = smul.u32 %s111, 128
    %s113 = sadd.s32 %s112, 0
    %s114 = sld [smem:[#allocation3 + %s113]]
    %s115 = sadd.s32 0, 0
    %s116 = smul.u32 %s115, 128
    %s117 = sadd.s32 %s116, 0
    %s118 = sld [smem:[#allocation4 + %s117]]
    %p119 = scmp.lt.s32.totalorder %s118, 0
    %s120 = scalar_select %p119, %s118, 0
    %s121 = smul.addr %s120, 8
    %s122 = scalar_lea.vmem %s6, %s121
    %s123 = sadd.s32 0, 0
    %s124 = smul.u32 %s123, 128
    %s125 = sadd.s32 %s124, 0
    %s126 = sld [smem:[#allocation4 + %s125]]
    %p127 = scmp.eq.s32.totalorder 0, 0
    // Predicated region
    $region30: #{tpu_custom_call.1} parent=1 // pred_check
      %p128 = pneg %p127
    $region31: #{tpu_custom_call.1} parent=1 // pred_check_branch
      %130 = sbr.rel (%p128) target = $region33
    $region32: #{tpu_custom_call.1} parent=1 // pred_region
      %vm131 = vcmask 64512
      %132 = vst.msk [vmem:[#allocation12] sm:$0xff] %vm131, 0.0
    $region33: #{tpu_custom_call.1} parent=1 // pred_fallthru
      _
    %v133 = vld [vmem:[#allocation6] sm:$0xff]
    %v134 = vld [vmem:[#allocation9] sm:$0xff]
    %vm135 = vcmask 261120
    %v137 = vsel %vm135, %v133, 0
    %v140 = vsel %vm135, %v134, 0
    %142 = vmatpush.xpose.msra.mxu0 0.0
    %143 = vmatpush.xpose.msra.mxu0 0.0
    %144 = vmatpush.xpose.msra.mxu0 0.0
    %145 = vmatpush.xpose.msra.mxu0 0.0
    %146 = vmatpush.xpose.msra.mxu0 0.0
    %147 = vmatpush.xpose.msra.mxu0 0.0
    %148 = vmatpush.xpose.msra.mxu0 0.0
    %149 = vmatpush.xpose.msra.mxu0 0.0
    %150 = vmatpush.xpose.msra.mxu0 0.0
    %151 = vmatpush.xpose.msra.mxu0 0.0
    %152 = vmatpush.xpose.msra.mxu0 0.0
    %153 = vmatpush.xpose.msra.mxu0 0.0
    %154 = vmatpush.xpose.msra.mxu0 0.0
    %155 = vmatpush.xpose.msra.mxu0 0.0
    %156 = vmatpush.xpose.msra.mxu0 0.0
    %157 = vmatpush.xpose.msra.mxu0 %v140
    %158 = vmatmul.f32.gmra.mxu0 %v137
    %v159 = vpop.f32.mrf.mxu0
    %v160 = vadd.f32 0.0, %v159
    %161 = vdwg.mxu0
    %v162 = vld [vmem:[#allocation11] sm:$0xff]
    %v163 = vld [vmem:[%s122] sm:$0xff]
    %v165 = vsel %vm135, %v162, 0
    %v168 = vsel %vm135, %v163, 0
    %170 = vmatpush.xpose.msra.mxu0 0.0
    %171 = vmatpush.xpose.msra.mxu0 0.0
    %172 = vmatpush.xpose.msra.mxu0 0.0
    %173 = vmatpush.xpose.msra.mxu0 0.0
    %174 = vmatpush.xpose.msra.mxu0 0.0
    %175 = vmatpush.xpose.msra.mxu0 0.0
    %176 = vmatpush.xpose.msra.mxu0 0.0
    %177 = vmatpush.xpose.msra.mxu0 0.0
    %178 = vmatpush.xpose.msra.mxu0 0.0
    %179 = vmatpush.xpose.msra.mxu0 0.0
    %180 = vmatpush.xpose.msra.mxu0 0.0
    %181 = vmatpush.xpose.msra.mxu0 0.0
    %182 = vmatpush.xpose.msra.mxu0 0.0
    %183 = vmatpush.xpose.msra.mxu0 0.0
    %184 = vmatpush.xpose.msra.mxu0 0.0
    %185 = vmatpush.xpose.msra.mxu0 %v168
    %186 = vmatmul.f32.gmra.mxu0 %v165
    %v187 = vpop.f32.mrf.mxu0
    %v188 = vadd.f32 0.0, %v187
    %189 = vdwg.mxu0
    %v190 = vsub.f32 %v160, %v188
    %v191 = vadd.f32 %v160, %v188
    %v192 = vmul.f32 %v191, 0.14378527
    %v193 = vadd.f32 %v192, 0.35946319
    %v194 = vmul.f32 %v190, %v193
    %s195 = sadd.s32 0, 0
    %s196 = smul.u32 %s195, 128
    %s197 = sadd.s32 %s196, 0
    %s198 = sld [smem:[#allocation5 + %s197]]
    %s199 = scvt.s32.f32 %s198
    %v200 = vld [vmem:[#allocation12] sm:$0xff]
    %v201 = vmul.f32 %v194, %v194
    %v202 = vstv %s199
    %v203 = vmul.f32 %v202, %v201
    %v204 = vadd.f32 %v200, %v203
    %vm205 = vcmask 64512
    %206 = vst.msk [vmem:[#allocation12] sm:$0xff] %vm205, %v204
    // Predicated region
    $region34: #{tpu_custom_call.1} parent=1 // pred_check
      _
    $region35: #{tpu_custom_call.1} parent=1 // pred_check_branch
      %208 = sbr.rel (0) target = $region37
    $region36: #{tpu_custom_call.1} parent=1 // pred_region
      %210 = vsyncadd [#allocation8], 0
      %s212 = sshll.u32 [#allocation12], 4
      %s213 = int_to_ptr.vmem [resolvable:$true] %s212
      %s214 = sshll.u32 %s7, 4
      %s215 = int_to_ptr.hbm [resolvable:$true] %s214
      %217 = dma.vmem_to_hbm [thread:$0]  %s213, 128, %s215, [#allocation8]
    $region37: #{tpu_custom_call.1} parent=1 // pred_fallthru
      _
    // Predicated region
    $region38: #{tpu_custom_call.1} parent=1 // pred_check
      _
    $region39: #{tpu_custom_call.1} parent=1 // pred_check_branch
      %219 = sbr.rel (0) target = $region41
    $region40: #{tpu_custom_call.1} parent=1 // pred_region
      %221 = dma.done [#allocation8], 128
    $region41: #{tpu_custom_call.1} parent=1 // pred_fallthru
      _
    %222 = vsyncpa [#allocation7], 1
    %223 = vsyncpa [#allocation10], 1
    %224 = vsyncpa [#allocation8], 1

</llo_original>
